<compile_context>
chip_gen: v5e
topology: v5e:2x2
jax: 0.10.0
libtpu: 0.0.40
codegen_flags: <defaults>
</compile_context>

<pallas_src>
import functools
import math

import jax
import jax.numpy as jnp
from jax import lax
from jax.experimental import pallas as pl
from jax.experimental.pallas import tpu as pltpu


def _ntxent_kernel(emb_i_ref, emb_j_ref, loss_ref, *, inv_t: float):
    span = emb_i_ref.shape[0]

    xi = emb_i_ref[...].astype(jnp.float32)
    xj = emb_j_ref[...].astype(jnp.float32)

    # F.normalize(dim=1, eps=1e-12): x / max(||x||, eps) == x * rsqrt(max(||x||^2, eps^2))
    eps = 1e-12
    ss_i = jnp.sum(xi * xi, axis=1, keepdims=True)
    ss_j = jnp.sum(xj * xj, axis=1, keepdims=True)
    inv_n_i = lax.rsqrt(jnp.maximum(ss_i, eps * eps))
    inv_n_j = lax.rsqrt(jnp.maximum(ss_j, eps * eps))

    zi = xi * inv_n_i                     # normalized
    zj = xj * inv_n_j
    zi_s = xi * (inv_n_i * inv_t)         # normalized, pre-scaled by 1/temperature
    zj_s = xj * (inv_n_j * inv_t)

    # 2x2 block structure of (reps @ reps.T) / temp; contraction on the last
    # dim of both operands (no transpose materialization, no concatenate).
    # s_ji is never formed: it equals s_ij.T, handled via column sums below.
    dn = (((1,), (1,)), ((), ()))
    s_ii = lax.dot_general(zi_s, zi, dn, preferred_element_type=jnp.float32)
    s_ij = lax.dot_general(zi_s, zj, dn, preferred_element_type=jnp.float32)
    s_jj = lax.dot_general(zj_s, zj, dn, preferred_element_type=jnp.float32)

    e_ii = jnp.exp(s_ii)
    e_ij = jnp.exp(s_ij)
    e_jj = jnp.exp(s_jj)

    # Diagonal self-similarity of an L2-normalized row is exactly 1, so the
    # masked-out self term is the constant exp(1/t) (folded at trace time).
    e_self = math.exp(inv_t)

    # i-half denominators, natural (span, 1) layout.
    den_i = (jnp.sum(e_ii, axis=1, keepdims=True)
             + jnp.sum(e_ij, axis=1, keepdims=True) - e_self)
    # j-half denominators, natural (1, span) layout: row sums of s_ji / s_jj
    # are column sums of e_ij / e_jj (block symmetry) — no extra matmul/exp.
    den_j = (jnp.sum(e_jj, axis=0, keepdims=True)
             + jnp.sum(e_ij, axis=0, keepdims=True) - e_self)

    # positives / temperature: the same row-wise zi·zj dot serves both halves.
    pos = jnp.sum(zi_s * zj, axis=1, keepdims=True)      # (span, 1)

    # -log(exp(p/t) / den) summed over all 2*span rows:
    #   sum(log den_i) + sum(log den_j) - 2 * sum(p/t)
    total = (jnp.sum(jnp.log(den_i)) + jnp.sum(jnp.log(den_j))
             - 2.0 * jnp.sum(pos))
    loss_ref[0, 0] = total / jnp.float32(2 * span)


def contrastive_loss(emb_i, emb_j, temperature=0.5):
    assert emb_i.shape == emb_j.shape and emb_i.ndim == 2
    span, hidden = emb_i.shape
    inv_t = 1.0 / float(temperature)

    # Rough f32 VMEM footprint of the single-block kernel: raw + normalized +
    # scaled copies of the inputs, plus three (span, span) sim blocks and
    # their exp tiles.
    est_bytes = 4 * (6 * span * hidden + 6 * span * span) + (1 << 20)
    compiler_params = None
    if est_bytes > (16 << 20):
        # Raise scoped VMEM (v5e default is 16 MiB, v6e/v7x 32 MiB).
        compiler_params = pltpu.CompilerParams(
            vmem_limit_bytes=min(2 * est_bytes, 100 << 20))
    # TODO(synk): for spans where the (span, span) blocks no longer fit in VMEM,
    # switch to a column-blocked grid that streams column tiles and accumulates
    # the per-row denominators in VMEM scratch (no online max needed: sim/t is
    # bounded because rows are L2-normalized).

    out = pl.pallas_call(
        functools.partial(_ntxent_kernel, inv_t=inv_t),
        out_shape=jax.ShapeDtypeStruct((1, 1), jnp.float32),
        in_specs=[
            pl.BlockSpec(memory_space=pltpu.MemorySpace.VMEM),   # emb_i (span, D)
            pl.BlockSpec(memory_space=pltpu.MemorySpace.VMEM),   # emb_j (span, D)
        ],
        out_specs=pl.BlockSpec(memory_space=pltpu.MemorySpace.SMEM),
        compiler_params=compiler_params,
    )(emb_i.astype(jnp.float32), emb_j.astype(jnp.float32))
    return out[0, 0]


def _reference_loss(emb_i, emb_j, temperature=0.5):
    """Pure-JAX reference mirroring the PyTorch module exactly."""
    span = emb_i.shape[0]

    def _norm(x):
        return x / jnp.maximum(jnp.linalg.norm(x, axis=1, keepdims=True), 1e-12)

    reps = jnp.concatenate([_norm(emb_i), _norm(emb_j)], axis=0)
    sim = reps @ reps.T
    sim_ij = jnp.diagonal(sim, span)
    sim_ji = jnp.diagonal(sim, -span)
    positives = jnp.concatenate([sim_ij, sim_ji], axis=0)
    nominator = jnp.exp(positives / temperature)
    mask = ~jnp.eye(2 * span, dtype=bool)
    denominator = jnp.sum(mask * jnp.exp(sim / temperature), axis=1)
    loss_partial = -jnp.log(nominator / denominator)
    return jnp.sum(loss_partial) / (2 * span)


if __name__ == "__main__":
    span, hidden = 8, 32          # small shapes: batch of 8 spans, hidden=32
    key = jax.random.PRNGKey(0)
    k_i, k_j = jax.random.split(key)
    emb_i = jax.random.normal(k_i, (span, hidden), dtype=jnp.float32)
    emb_j = jax.random.normal(k_j, (span, hidden), dtype=jnp.float32)

    loss = contrastive_loss(emb_i, emb_j, temperature=0.5)
    jax.block_until_ready(loss)

    ref = _reference_loss(emb_i, emb_j, temperature=0.5)
    assert jnp.allclose(loss, ref, rtol=1e-5, atol=1e-5), (loss, ref)

    print("KERNEL_OK")
</pallas_src>

<mosaic_0001>
module attributes {stable_mosaic.version = 11 : i64} {
  func.func @_ntxent_kernel(%arg0: memref<8x32xf32, #tpu.memory_space<vmem>>, %arg1: memref<8x32xf32, #tpu.memory_space<vmem>>, %arg2: memref<1x1xf32, #tpu.memory_space<smem>>) attributes {dimension_semantics = [], scalar_prefetch = 0 : i64, scratch_operands = 0 : i64, tpu.core_type = #tpu.core_type<tc>} {
    %c0 = arith.constant 0 : index
    %c0_0 = arith.constant 0 : index
    %0 = vector.load %arg0[%c0, %c0_0] : memref<8x32xf32, #tpu.memory_space<vmem>>, vector<8x32xf32>
    %c0_1 = arith.constant 0 : index
    %c0_2 = arith.constant 0 : index
    %1 = vector.load %arg1[%c0_1, %c0_2] : memref<8x32xf32, #tpu.memory_space<vmem>>, vector<8x32xf32>
    %2 = arith.mulf %0, %0 : vector<8x32xf32>
    %cst = arith.constant dense<0.000000e+00> : vector<8xf32>
    %3 = vector.multi_reduction <add>, %2, %cst [1] : vector<8x32xf32> to vector<8xf32>
    %4 = vector.shape_cast %3 : vector<8xf32> to vector<8x1xf32>
    %5 = arith.mulf %1, %1 : vector<8x32xf32>
    %cst_3 = arith.constant dense<0.000000e+00> : vector<8xf32>
    %6 = vector.multi_reduction <add>, %5, %cst_3 [1] : vector<8x32xf32> to vector<8xf32>
    %7 = vector.shape_cast %6 : vector<8xf32> to vector<8x1xf32>
    %cst_4 = arith.constant 1.000000e-24 : f32
    %8 = vector.broadcast %cst_4 : f32 to vector<8x1xf32>
    %9 = arith.maximumf %4, %8 : vector<8x1xf32>
    %10 = math.rsqrt %9 : vector<8x1xf32>
    %cst_5 = arith.constant 1.000000e-24 : f32
    %11 = vector.broadcast %cst_5 : f32 to vector<8x1xf32>
    %12 = arith.maximumf %7, %11 : vector<8x1xf32>
    %13 = math.rsqrt %12 : vector<8x1xf32>
    %14 = vector.broadcast %10 : vector<8x1xf32> to vector<8x32xf32>
    %15 = arith.mulf %0, %14 : vector<8x32xf32>
    %16 = vector.broadcast %13 : vector<8x1xf32> to vector<8x32xf32>
    %17 = arith.mulf %1, %16 : vector<8x32xf32>
    %cst_6 = arith.constant 2.000000e+00 : f32
    %18 = vector.broadcast %cst_6 : f32 to vector<8x1xf32>
    %19 = arith.mulf %10, %18 : vector<8x1xf32>
    %20 = vector.broadcast %19 : vector<8x1xf32> to vector<8x32xf32>
    %21 = arith.mulf %0, %20 : vector<8x32xf32>
    %cst_7 = arith.constant 2.000000e+00 : f32
    %22 = vector.broadcast %cst_7 : f32 to vector<8x1xf32>
    %23 = arith.mulf %13, %22 : vector<8x1xf32>
    %24 = vector.broadcast %23 : vector<8x1xf32> to vector<8x32xf32>
    %25 = arith.mulf %1, %24 : vector<8x32xf32>
    %cst_8 = arith.constant dense<0.000000e+00> : vector<8x8xf32>
    %26 = tpu.matmul %21, %15, %cst_8 {dimension_numbers = #tpu.dot_dimension_numbers<[1], [1], [0], [0], [0, 0, 1, 0], [], []>} : vector<8x32xf32>, vector<8x32xf32>, vector<8x8xf32> -> vector<8x8xf32>
    %cst_9 = arith.constant dense<0.000000e+00> : vector<8x8xf32>
    %27 = tpu.matmul %21, %17, %cst_9 {dimension_numbers = #tpu.dot_dimension_numbers<[1], [1], [0], [0], [0, 0, 1, 0], [], []>} : vector<8x32xf32>, vector<8x32xf32>, vector<8x8xf32> -> vector<8x8xf32>
    %cst_10 = arith.constant dense<0.000000e+00> : vector<8x8xf32>
    %28 = tpu.matmul %25, %17, %cst_10 {dimension_numbers = #tpu.dot_dimension_numbers<[1], [1], [0], [0], [0, 0, 1, 0], [], []>} : vector<8x32xf32>, vector<8x32xf32>, vector<8x8xf32> -> vector<8x8xf32>
    %29 = math.exp %26 : vector<8x8xf32>
    %30 = math.exp %27 : vector<8x8xf32>
    %31 = math.exp %28 : vector<8x8xf32>
    %cst_11 = arith.constant dense<0.000000e+00> : vector<8xf32>
    %32 = vector.multi_reduction <add>, %29, %cst_11 [1] : vector<8x8xf32> to vector<8xf32>
    %33 = vector.shape_cast %32 : vector<8xf32> to vector<8x1xf32>
    %cst_12 = arith.constant dense<0.000000e+00> : vector<8xf32>
    %34 = vector.multi_reduction <add>, %30, %cst_12 [1] : vector<8x8xf32> to vector<8xf32>
    %35 = vector.shape_cast %34 : vector<8xf32> to vector<8x1xf32>
    %36 = arith.addf %33, %35 : vector<8x1xf32>
    %cst_13 = arith.constant 7.3890562 : f32
    %37 = vector.broadcast %cst_13 : f32 to vector<8x1xf32>
    %38 = arith.subf %36, %37 : vector<8x1xf32>
    %cst_14 = arith.constant dense<0.000000e+00> : vector<8xf32>
    %39 = vector.multi_reduction <add>, %31, %cst_14 [0] : vector<8x8xf32> to vector<8xf32>
    %40 = vector.shape_cast %39 : vector<8xf32> to vector<1x8xf32>
    %cst_15 = arith.constant dense<0.000000e+00> : vector<8xf32>
    %41 = vector.multi_reduction <add>, %30, %cst_15 [0] : vector<8x8xf32> to vector<8xf32>
    %42 = vector.shape_cast %41 : vector<8xf32> to vector<1x8xf32>
    %43 = arith.addf %40, %42 : vector<1x8xf32>
    %cst_16 = arith.constant 7.3890562 : f32
    %44 = vector.broadcast %cst_16 : f32 to vector<1x8xf32>
    %45 = arith.subf %43, %44 : vector<1x8xf32>
    %46 = arith.mulf %21, %17 : vector<8x32xf32>
    %cst_17 = arith.constant dense<0.000000e+00> : vector<8xf32>
    %47 = vector.multi_reduction <add>, %46, %cst_17 [1] : vector<8x32xf32> to vector<8xf32>
    %48 = vector.shape_cast %47 : vector<8xf32> to vector<8x1xf32>
    %49 = math.log %38 : vector<8x1xf32>
    %50 = vector.shape_cast %49 : vector<8x1xf32> to vector<1x8x1xf32>
    %cst_18 = arith.constant dense<0.000000e+00> : vector<1xf32>
    %51 = vector.multi_reduction <add>, %50, %cst_18 [1, 2] : vector<1x8x1xf32> to vector<1xf32>
    %52 = vector.shape_cast %51 : vector<1xf32> to vector<1x1x1xf32>
    %53 = vector.extract %52[0, 0, 0] : f32 from vector<1x1x1xf32>
    %54 = math.log %45 : vector<1x8xf32>
    %55 = vector.shape_cast %54 : vector<1x8xf32> to vector<1x1x8xf32>
    %cst_19 = arith.constant dense<0.000000e+00> : vector<1xf32>
    %56 = vector.multi_reduction <add>, %55, %cst_19 [1, 2] : vector<1x1x8xf32> to vector<1xf32>
    %57 = vector.shape_cast %56 : vector<1xf32> to vector<1x1x1xf32>
    %58 = vector.extract %57[0, 0, 0] : f32 from vector<1x1x1xf32>
    %59 = arith.addf %53, %58 : f32
    %60 = vector.shape_cast %48 : vector<8x1xf32> to vector<1x8x1xf32>
    %cst_20 = arith.constant dense<0.000000e+00> : vector<1xf32>
    %61 = vector.multi_reduction <add>, %60, %cst_20 [1, 2] : vector<1x8x1xf32> to vector<1xf32>
    %62 = vector.shape_cast %61 : vector<1xf32> to vector<1x1x1xf32>
    %63 = vector.extract %62[0, 0, 0] : f32 from vector<1x1x1xf32>
    %cst_21 = arith.constant 2.000000e+00 : f32
    %64 = arith.mulf %cst_21, %63 : f32
    %65 = arith.subf %59, %64 : f32
    %cst_22 = arith.constant 1.600000e+01 : f32
    %66 = arith.divf %65, %cst_22 : f32
    %c0_23 = arith.constant 0 : index
    %c0_24 = arith.constant 0 : index
    %67 = memref.load %arg2[%c0_23, %c0_24] : memref<1x1xf32, #tpu.memory_space<smem>>
    memref.store %66, %arg2[%c0_23, %c0_24] : memref<1x1xf32, #tpu.memory_space<smem>>
    return
  }
}

</mosaic_0001>

<llo_original>
// kernel: tpu_custom_call.1
$region0: #{tpu_custom_call.1}
  #allocation0 [shape = 'u32[]', space=smem, size = 0x4, offset = 0x4, fixed_abs, tag = 'smem constant byte address 0x4 - core index']
  #allocation1 [shape = 'u32[72,128]{1,0:T(1,128)}', space=vmem, size = 0x9000, scoped, tag = 'internal scratch']
  %s0 = inlined_call_operand.hbm [shape: f32[8,32], index: 0, kind: input, shape index: {}]
  %s1 = inlined_call_operand.hbm [shape: f32[8,32], index: 1, kind: input, shape index: {}]
  %s2 = inlined_call_operand.hbm [shape: f32[1,1], index: 2, kind: output, shape index: {}]
  %s3 = sld [smem:[#allocation0]]
  $region26: #{tpu_custom_call.1} parent=0
    _
  %s5 = ssub.s32 1, %s3
  %s6 = scalar_select 0, %s5, %s3
  $region1: #{tpu_custom_call.1} parent=0
    #allocation2 [shape = 'u8[4096]{0}', space=vmem, size = 0x1000, scoped, tag = 'input window, operand 0, single buffered']
    #allocation3 [shape = 's32[1]{0}', space=sflag, size = 0x4, scoped, tag = 'scoped memory for tpu_custom_call.1']
    #allocation4 [shape = 's32[1]{0}', space=sflag, size = 0x4, scoped, tag = 'scoped memory for tpu_custom_call.1']
    #allocation5 [shape = 'u8[4096]{0}', space=vmem, size = 0x1000, scoped, tag = 'input window, operand 1, single buffered']
    #allocation6 [shape = 's32[1]{0}', space=sflag, size = 0x4, scoped, tag = 'scoped memory for tpu_custom_call.1']
    #allocation7 [shape = 'u8[512]{0}', space=smem, size = 0x200, scoped, tag = 'output window, operand 0, single buffered']
    %7 = vsyncpa [#allocation3], 0
    %8 = vsyncpa [#allocation6], 0
    %9 = vsyncpa [#allocation4], 0
    // Predicated region
    $region2: #{tpu_custom_call.1} parent=1 // pred_check
      _
    $region3: #{tpu_custom_call.1} parent=1 // pred_check_branch
      %11 = sbr.rel (0) target = $region5
    $region4: #{tpu_custom_call.1} parent=1 // pred_region
      %13 = vsyncadd [#allocation3], 0
      %s15 = sshll.u32 %s0, 4
      %s16 = int_to_ptr.hbm [resolvable:$true] %s15
      %s17 = sshll.u32 [#allocation2], 4
      %s18 = int_to_ptr.vmem [resolvable:$true] %s17
      %20 = dma.hbm_to_vmem [thread:$0]  %s16, 128, %s18, [#allocation3]
    $region5: #{tpu_custom_call.1} parent=1 // pred_fallthru
      _
    // Predicated region
    $region6: #{tpu_custom_call.1} parent=1 // pred_check
      _
    $region7: #{tpu_custom_call.1} parent=1 // pred_check_branch
      %22 = sbr.rel (0) target = $region9
    $region8: #{tpu_custom_call.1} parent=1 // pred_region
      %24 = vsyncadd [#allocation6], 0
      %s26 = sshll.u32 %s1, 4
      %s27 = int_to_ptr.hbm [resolvable:$true] %s26
      %s28 = sshll.u32 [#allocation5], 4
      %s29 = int_to_ptr.vmem [resolvable:$true] %s28
      %31 = dma.hbm_to_vmem [thread:$0]  %s27, 128, %s29, [#allocation6]
    $region9: #{tpu_custom_call.1} parent=1 // pred_fallthru
      _
    // Predicated region
    $region10: #{tpu_custom_call.1} parent=1 // pred_check
      _
    $region11: #{tpu_custom_call.1} parent=1 // pred_check_branch
      %33 = sbr.rel (0) target = $region13
    $region12: #{tpu_custom_call.1} parent=1 // pred_region
      %35 = dma.done [#allocation3], 128
    $region13: #{tpu_custom_call.1} parent=1 // pred_fallthru
      _
    // Predicated region
    $region14: #{tpu_custom_call.1} parent=1 // pred_check
      _
    $region15: #{tpu_custom_call.1} parent=1 // pred_check_branch
      %37 = sbr.rel (0) target = $region17
    $region16: #{tpu_custom_call.1} parent=1 // pred_region
      %39 = dma.done [#allocation6], 128
    $region17: #{tpu_custom_call.1} parent=1 // pred_fallthru
      _
    %v40 = vld [vmem:[#allocation2] sm:$0xff]
    %v41 = vld [vmem:[#allocation5] sm:$0xff]
    %v42 = vmul.f32 %v40, %v40
    %vm43 = vcmask 261120
    %v44 = vsel %vm43, %v42, 0.0
    %45 = vadd.xlane.f32.xlu0 %v44
    %v46 = vpop.xlane.xlu0 %45
    %v47 = vmul.f32 %v41, %v41
    %v48 = vsel %vm43, %v47, 0.0
    %49 = vadd.xlane.f32.xlu0 %v48
    %v50 = vpop.xlane.xlu0 %49
    %v51 = vmax.f32 %v46, 1e-24
    %v52 = vrsqrt.pop %v51
    %v53 = vmul.f32 %v52, %v51
    %v54 = vmul.f32 %v53, %v52
    %v55 = vmul.f32 0.5, %v54
    %v56 = vsub.f32 1.5, %v55
    %v57 = vmul.f32 %v52, %v56
    %vm58 = vweird.f32 %v51
    %vm59 = vweird.f32 %v52
    %vm60 = vmor %vm58, %vm59
    %v61 = vsel %vm60, %v52, %v57
    %v62 = vmax.f32 %v50, 1e-24
    %v63 = vrsqrt.pop %v62
    %v64 = vmul.f32 %v63, %v62
    %v65 = vmul.f32 %v64, %v63
    %v66 = vmul.f32 0.5, %v65
    %v67 = vsub.f32 1.5, %v66
    %v68 = vmul.f32 %v63, %v67
    %vm69 = vweird.f32 %v62
    %vm70 = vweird.f32 %v63
    %vm71 = vmor %vm69, %vm70
    %v72 = vsel %vm71, %v63, %v68
    %v73 = vmul.f32 %v40, %v61
    %v74 = vmul.f32 %v41, %v72
    %v75 = vmul.f32 %v61, 2.0
    %v76 = vmul.f32 %v40, %v75
    %v77 = vmul.f32 %v72, 2.0
    %v78 = vmul.f32 %v41, %v77
    %v80 = vsel %vm43, %v76, 0
    %v83 = vsel %vm43, %v73, 0
    %85 = vmatpush.xpose.msra.mxu0 0.0
    %86 = vmatpush.xpose.msra.mxu0 0.0
    %87 = vmatpush.xpose.msra.mxu0 0.0
    %88 = vmatpush.xpose.msra.mxu0 0.0
    %89 = vmatpush.xpose.msra.mxu0 0.0
    %90 = vmatpush.xpose.msra.mxu0 0.0
    %91 = vmatpush.xpose.msra.mxu0 0.0
    %92 = vmatpush.xpose.msra.mxu0 0.0
    %93 = vmatpush.xpose.msra.mxu0 0.0
    %94 = vmatpush.xpose.msra.mxu0 0.0
    %95 = vmatpush.xpose.msra.mxu0 0.0
    %96 = vmatpush.xpose.msra.mxu0 0.0
    %97 = vmatpush.xpose.msra.mxu0 0.0
    %98 = vmatpush.xpose.msra.mxu0 0.0
    %99 = vmatpush.xpose.msra.mxu0 0.0
    %100 = vmatpush.xpose.msra.mxu0 %v83
    %101 = vmatmul.f32.gmra.mxu0 %v80
    %v102 = vpop.f32.mrf.mxu0
    %v103 = vadd.f32 0.0, %v102
    %104 = vdwg.mxu0
    %v106 = vsel %vm43, %v74, 0
    %108 = vmatpush.xpose.msra.mxu0 0.0
    %109 = vmatpush.xpose.msra.mxu0 0.0
    %110 = vmatpush.xpose.msra.mxu0 0.0
    %111 = vmatpush.xpose.msra.mxu0 0.0
    %112 = vmatpush.xpose.msra.mxu0 0.0
    %113 = vmatpush.xpose.msra.mxu0 0.0
    %114 = vmatpush.xpose.msra.mxu0 0.0
    %115 = vmatpush.xpose.msra.mxu0 0.0
    %116 = vmatpush.xpose.msra.mxu0 0.0
    %117 = vmatpush.xpose.msra.mxu0 0.0
    %118 = vmatpush.xpose.msra.mxu0 0.0
    %119 = vmatpush.xpose.msra.mxu0 0.0
    %120 = vmatpush.xpose.msra.mxu0 0.0
    %121 = vmatpush.xpose.msra.mxu0 0.0
    %122 = vmatpush.xpose.msra.mxu0 0.0
    %123 = vmatpush.xpose.msra.mxu0 %v106
    %124 = vmatmul.f32.gmra.mxu0 %v80
    %v125 = vpop.f32.mrf.mxu0
    %v126 = vadd.f32 0.0, %v125
    %127 = vdwg.mxu0
    %v129 = vsel %vm43, %v78, 0
    %131 = vmatpush.xpose.msra.mxu0 0.0
    %132 = vmatpush.xpose.msra.mxu0 0.0
    %133 = vmatpush.xpose.msra.mxu0 0.0
    %134 = vmatpush.xpose.msra.mxu0 0.0
    %135 = vmatpush.xpose.msra.mxu0 0.0
    %136 = vmatpush.xpose.msra.mxu0 0.0
    %137 = vmatpush.xpose.msra.mxu0 0.0
    %138 = vmatpush.xpose.msra.mxu0 0.0
    %139 = vmatpush.xpose.msra.mxu0 0.0
    %140 = vmatpush.xpose.msra.mxu0 0.0
    %141 = vmatpush.xpose.msra.mxu0 0.0
    %142 = vmatpush.xpose.msra.mxu0 0.0
    %143 = vmatpush.xpose.msra.mxu0 0.0
    %144 = vmatpush.xpose.msra.mxu0 0.0
    %145 = vmatpush.xpose.msra.mxu0 0.0
    %146 = vmatpush.xpose.msra.mxu0 %v106
    %147 = vmatmul.f32.gmra.mxu0 %v129
    %v148 = vpop.f32.mrf.mxu0
    %v149 = vadd.f32 0.0, %v148
    %150 = vdwg.mxu0
    %v151 = vmul.f32 %v103, 1.442695
    %v152 = vpow.pop %v151
    %v153 = vmul.f32 %v126, 1.442695
    %v154 = vpow.pop %v153
    %v155 = vmul.f32 %v149, 1.442695
    %v156 = vpow.pop %v155
    %vm157 = vcmask 64512
    %v158 = vsel %vm157, %v152, 0.0
    %159 = vadd.xlane.f32.xlu0 %v158
    %v160 = vpop.xlane.xlu0 %159
    %v161 = vsel %vm157, %v154, 0.0
    %162 = vadd.xlane.f32.xlu0 %v161
    %v163 = vpop.xlane.xlu0 %162
    %v164 = vadd.f32 %v160, %v163
    %v165 = vsub.f32 %v164, 7.389056
    %v166 = vsel %vm157, %v156, 0.0
    %v167 = vrot.slane %v166, 4
    %v168 = vadd.f32 %v166, %v167
    %v169 = vrot.slane %v168, 2
    %v170 = vadd.f32 %v168, %v169
    %v171 = vrot.slane %v170, 1
    %v172 = vadd.f32 %v170, %v171
    %v173 = vrot.slane %v161, 4
    %v174 = vadd.f32 %v161, %v173
    %v175 = vrot.slane %v174, 2
    %v176 = vadd.f32 %v174, %v175
    %v177 = vrot.slane %v176, 1
    %v178 = vadd.f32 %v176, %v177
    %v179 = vadd.f32 %v172, %v178
    %v180 = vsub.f32 %v179, 7.389056
    %v181 = vmul.f32 %v76, %v74
    %v182 = vsel %vm43, %v181, 0.0
    %183 = vadd.xlane.f32.xlu0 %v182
    %v184 = vpop.xlane.xlu0 %183
    %v185 = vlog2.pop %v165
    %v186 = vmul.f32 %v185, 0.6931472
    %vm187 = vcmask 7168
    %v188 = vsel %vm187, %v186, 0.0
    %189 = vadd.xlane.f32.xlu0 %v188
    %v190 = vpop.xlane.xlu0 %189
    %v191 = vrot.slane %v190, 4
    %v192 = vadd.f32 %v190, %v191
    %v193 = vrot.slane %v192, 2
    %v194 = vadd.f32 %v192, %v193
    %v195 = vrot.slane %v194, 1
    %v196 = vadd.f32 %v194, %v195
    %s197 = vtos %v196
    %v198 = vlog2.pop %v180
    %v199 = vmul.f32 %v198, 0.6931472
    %vm200 = vcmask 57344
    %v201 = vsel %vm200, %v199, 0.0
    %202 = vadd.xlane.f32.xlu0 %v201
    %v203 = vpop.xlane.xlu0 %202
    %v204 = vrot.slane %v203, 4
    %v205 = vadd.f32 %v203, %v204
    %v206 = vrot.slane %v205, 2
    %v207 = vadd.f32 %v205, %v206
    %v208 = vrot.slane %v207, 1
    %v209 = vadd.f32 %v207, %v208
    %s210 = vtos %v209
    %s211 = sadd.f32 %s197, %s210
    %v212 = vsel %vm187, %v184, 0.0
    %213 = vadd.xlane.f32.xlu0 %v212
    %v214 = vpop.xlane.xlu0 %213
    %v215 = vrot.slane %v214, 4
    %v216 = vadd.f32 %v214, %v215
    %v217 = vrot.slane %v216, 2
    %v218 = vadd.f32 %v216, %v217
    %v219 = vrot.slane %v218, 1
    %v220 = vadd.f32 %v218, %v219
    %s221 = vtos %v220
    %s222 = smul.f32 %s221, 2.0
    %s223 = ssub.f32 %s211, %s222
    %v224 = vrcp.pop 16.0
    %v225 = vmul.f32 16.0, %v224
    %v226 = vsub.f32 1.0, %v225
    %v227 = vmul.f32 %v224, %v226
    %v228 = vadd.f32 %v224, %v227
    %vm229 = vweird.f32 %v224
    %v230 = vsel %vm229, %v224, %v228
    %s231 = vtos %v230
    %s232 = smul.f32 %s223, %s231
    %s233 = scalar_lea.smem [#allocation7], 0
    %234 = sst [smem:[%s233]] %s232
    // Predicated region
    $region18: #{tpu_custom_call.1} parent=1 // pred_check
      _
    $region19: #{tpu_custom_call.1} parent=1 // pred_check_branch
      %236 = sbr.rel (0) target = $region21
    $region20: #{tpu_custom_call.1} parent=1 // pred_region
      %238 = vsyncadd [#allocation4], 0
      %s240 = sshll.u32 %s2, 4
      %s241 = int_to_ptr.hbm [resolvable:$true] %s240
      %243 = dma.smem_to_hbm [#allocation7], 16, %s241, [#allocation4]
    $region21: #{tpu_custom_call.1} parent=1 // pred_fallthru
      _
    // Predicated region
    $region22: #{tpu_custom_call.1} parent=1 // pred_check
      _
    $region23: #{tpu_custom_call.1} parent=1 // pred_check_branch
      %245 = sbr.rel (0) target = $region25
    $region24: #{tpu_custom_call.1} parent=1 // pred_region
      %247 = dma.done [#allocation4], 16
    $region25: #{tpu_custom_call.1} parent=1 // pred_fallthru
      _
    %248 = sfence
    %249 = vsyncpa [#allocation3], 1
    %250 = vsyncpa [#allocation6], 1
    %251 = vsyncpa [#allocation4], 1

</llo_original>
